<compile_context>
chip_gen: v7x
topology: tpu7x:2x2x1
jax: 0.10.0
libtpu: 0.0.40
codegen_flags: <defaults>
</compile_context>

<pallas_src>
import jax
import jax.numpy as jnp
from jax.experimental import pallas as pl
from jax.experimental.pallas import tpu as pltpu

LANE = 128


def _round_up(x, m):
    return (x + m - 1) // m * m


def _leaky_relu(x, slope=0.2):
    return jnp.where(x > 0, x, slope * x)


def generator_kernel(x_ref, w0_ref, w1_ref, w2_ref, w3_ref, b_ref, o_ref):
    """Fused 4-layer MLP on one (TB, n_in) batch tile.

    x_ref is f32 (streamed from HBM); it is cast to bf16 on the VPU just before
    the first MXU op. w*_ref are bf16 (resident). Accumulation and all
    elementwise math (bias add, LeakyReLU, tanh) are f32. b_ref is the (4, PAD)
    stacked f32 bias. All operands are zero-padded to 128-lane widths in the
    wrapper, so padded columns stay exactly zero through every hidden layer
    (LeakyReLU(0)=0, zero W rows).
    """
    x = x_ref[...].astype(jnp.bfloat16)

    # hidden0: Linear -> LeakyReLU(0.2) -> Dropout(identity, eval)
    h = jnp.dot(x, w0_ref[...], preferred_element_type=jnp.float32)
    h = _leaky_relu(h + b_ref[0:1, :])

    # hidden1
    h = jnp.dot(h.astype(jnp.bfloat16), w1_ref[...],
                preferred_element_type=jnp.float32)
    h = _leaky_relu(h + b_ref[1:2, :])

    # hidden2
    h = jnp.dot(h.astype(jnp.bfloat16), w2_ref[...],
                preferred_element_type=jnp.float32)
    h = _leaky_relu(h + b_ref[2:3, :])

    # out: Linear -> Tanh
    y = jnp.dot(h.astype(jnp.bfloat16), w3_ref[...],
                preferred_element_type=jnp.float32)
    o_ref[...] = jnp.tanh(y + b_ref[3:4, :]).astype(o_ref.dtype)


def generator_net(x, params, *, block_b=4096, out_dtype=jnp.bfloat16,
                  trim_output=True):
    """x: (B, n_features_in) f32. params: ((W0,b0),...,(W3,b3)) with W shaped
    (in, out) (transpose of nn.Linear storage, identical semantics), b shaped
    (1, out). Returns (B, n_out) in `out_dtype`, or the padded lane-dense
    (B_pad, 128) block if trim_output=False (avoids an extra HBM pass)."""
    (w0, b0), (w1, b1), (w2, b2), (w3, b3) = params
    B, n_in = x.shape
    hidden = w0.shape[1]
    n_out = w3.shape[1]

    # common 128-lane padded width for hidden and output features
    PAD = max(_round_up(hidden, LANE), _round_up(n_out, LANE))

    def pad2(a, rows, cols):
        return jnp.pad(a, ((0, rows - a.shape[0]), (0, cols - a.shape[1])))

    # zero-pad weights to lane-dense shapes once, cast to bf16 for the MXU
    w0p = pad2(w0, n_in, PAD).astype(jnp.bfloat16)          # (n_in, PAD)
    w1p = pad2(w1, PAD, PAD).astype(jnp.bfloat16)           # (PAD, PAD)
    w2p = pad2(w2, PAD, PAD).astype(jnp.bfloat16)           # (PAD, PAD)
    w3p = pad2(w3, PAD, PAD).astype(jnp.bfloat16)           # (PAD, PAD)
    # stack the four biases into one lane-dense f32 array (padded lanes are 0)
    bcat = jnp.concatenate(
        [pad2(b.reshape(1, -1), 1, PAD) for b in (b0, b1, b2, b3)], axis=0
    ).astype(jnp.float32)                                    # (4, PAD)

    # Batch tile: large to amortize per-grid-step overhead, capped at ceil(B/2)
    # so large batches always yield >= 2 grid steps (v7x megacore), rounded to a
    # multiple of 16 for clean bf16 row packing of the output block.
    TB = min(_round_up(block_b, 16), _round_up(pl.cdiv(B, 2), 16))
    B_pad = _round_up(B, TB)
    # x stays f32; only pad rows when the batch doesn't divide the tile.
    x_p = x if B_pad == B else jnp.pad(x, ((0, B_pad - B), (0, 0)))

    resident = lambda i: (0, 0)   # weights/biases: same block every step -> VMEM-resident

    out = pl.pallas_call(
        generator_kernel,
        out_shape=jax.ShapeDtypeStruct((B_pad, PAD), out_dtype),
        grid=(B_pad // TB,),
        in_specs=[
            pl.BlockSpec((TB, n_in), lambda i: (i, 0)),      # x tile (streamed, f32)
            pl.BlockSpec((n_in, PAD), resident),             # W0
            pl.BlockSpec((PAD, PAD), resident),              # W1
            pl.BlockSpec((PAD, PAD), resident),              # W2
            pl.BlockSpec((PAD, PAD), resident),              # W3
            pl.BlockSpec((4, PAD), resident),                # stacked biases
        ],
        out_specs=pl.BlockSpec((TB, PAD), lambda i: (i, 0)), # lane-dense bf16 output
        compiler_params=pltpu.CompilerParams(
            dimension_semantics=("parallel",),               # megacore on v7x
            vmem_limit_bytes=32 * 1024 * 1024,               # headroom for TB=4096 on v5e
        ),
    )(x_p, w0p, w1p, w2p, w3p, bcat)

    if not trim_output:
        return out                     # (B_pad, PAD), no extra HBM slice pass
    return out[:B, :n_out]             # slice runs on the half-size bf16 array


def init_params(key, n_features_in, n_features_out, hidden=50):
    """Deterministic init mimicking PyTorch nn.Linear default
    (uniform(-1/sqrt(fan_in), 1/sqrt(fan_in)) for both W and b)."""
    dims = [(n_features_in, hidden), (hidden, hidden), (hidden, hidden),
            (hidden, n_features_out)]
    params = []
    for (fan_in, fan_out) in dims:
        key, kw, kb = jax.random.split(key, 3)
        bound = 1.0 / jnp.sqrt(jnp.float32(fan_in))
        w = jax.random.uniform(kw, (fan_in, fan_out), jnp.float32, -bound, bound)
        b = jax.random.uniform(kb, (1, fan_out), jnp.float32, -bound, bound)
        params.append((w, b))
    return tuple(params)


def generator_ref(x, params, matmul_dtype=jnp.float32):
    """Pure-JAX reference. matmul_dtype=bfloat16 emulates the kernel's MXU precision."""
    (w0, b0), (w1, b1), (w2, b2), (w3, b3) = params

    def dot(a, w):
        return jnp.dot(a.astype(matmul_dtype), w.astype(matmul_dtype),
                       preferred_element_type=jnp.float32)

    h = _leaky_relu(dot(x, w0) + b0)
    h = _leaky_relu(dot(h, w1) + b1)
    h = _leaky_relu(dot(h, w2) + b2)
    return jnp.tanh(dot(h, w3) + b3)


if __name__ == "__main__":
    key = jax.random.PRNGKey(0)
    n_features_in, n_features_out, batch = 32, 16, 8

    k_x, k_p = jax.random.split(key)
    x = jax.random.normal(k_x, (batch, n_features_in), jnp.float32)
    params = init_params(k_p, n_features_in, n_features_out)

    out = generator_net(x, params)
    out = jax.block_until_ready(out)
    assert out.shape == (batch, n_features_out)
    assert out.dtype == jnp.bfloat16
    out_f32 = out.astype(jnp.float32)
    assert bool(jnp.all(jnp.isfinite(out_f32)))

    # check against a reference using the same bf16-input / f32-accum matmuls
    # (tolerance covers the final bf16 output cast, ~4e-3 rel)
    ref_bf16 = generator_ref(x, params, matmul_dtype=jnp.bfloat16)
    assert jnp.allclose(out_f32, ref_bf16, atol=1e-2, rtol=1e-2), \
        "mismatch vs bf16 reference"

    # fidelity check against the full-f32 PyTorch-equivalent forward
    ref_f32 = generator_ref(x, params, matmul_dtype=jnp.float32)
    assert jnp.allclose(out_f32, ref_f32, atol=5e-2, rtol=5e-2), \
        "drift vs f32 reference"

    print("KERNEL_OK")
</pallas_src>

<mosaic_0001>
module attributes {stable_mosaic.version = 11 : i64} {
  func.func @generator_kernel(%arg0: i32, %arg1: memref<16x32xf32, #tpu.memory_space<vmem>>, %arg2: memref<32x128xbf16, #tpu.memory_space<vmem>>, %arg3: memref<128x128xbf16, #tpu.memory_space<vmem>>, %arg4: memref<128x128xbf16, #tpu.memory_space<vmem>>, %arg5: memref<128x128xbf16, #tpu.memory_space<vmem>>, %arg6: memref<4x128xf32, #tpu.memory_space<vmem>>, %arg7: memref<16x128xbf16, #tpu.memory_space<vmem>>) attributes {dimension_semantics = [#tpu.dimension_semantics<parallel>], iteration_bounds = array<i64: 1>, scalar_prefetch = 0 : i64, scratch_operands = 0 : i64, tpu.core_type = #tpu.core_type<tc>, window_params = [{transform_indices = @transform_0, window_bounds = array<i64: 16, 32>}, {pipeline_mode = #tpu.pipeline_mode<synchronous>, transform_indices = @transform_1, window_bounds = array<i64: 32, 128>}, {pipeline_mode = #tpu.pipeline_mode<synchronous>, transform_indices = @transform_2, window_bounds = array<i64: 128, 128>}, {pipeline_mode = #tpu.pipeline_mode<synchronous>, transform_indices = @transform_3, window_bounds = array<i64: 128, 128>}, {pipeline_mode = #tpu.pipeline_mode<synchronous>, transform_indices = @transform_4, window_bounds = array<i64: 128, 128>}, {pipeline_mode = #tpu.pipeline_mode<synchronous>, transform_indices = @transform_5, window_bounds = array<i64: 4, 128>}, {transform_indices = @transform_6, window_bounds = array<i64: 16, 128>}]} {
    %c0 = arith.constant 0 : index
    %c0_0 = arith.constant 0 : index
    %0 = vector.load %arg1[%c0, %c0_0] : memref<16x32xf32, #tpu.memory_space<vmem>>, vector<16x32xf32>
    %1 = arith.truncf %0 : vector<16x32xf32> to vector<16x32xbf16>
    %c0_1 = arith.constant 0 : index
    %c0_2 = arith.constant 0 : index
    %2 = vector.load %arg2[%c0_1, %c0_2] : memref<32x128xbf16, #tpu.memory_space<vmem>>, vector<32x128xbf16>
    %cst = arith.constant dense<0.000000e+00> : vector<16x128xf32>
    %3 = tpu.matmul %1, %2, %cst {dimension_numbers = #tpu.dot_dimension_numbers<[1], [0], [0], [1], [0, 0, 1, 1], [], []>} : vector<16x32xbf16>, vector<32x128xbf16>, vector<16x128xf32> -> vector<16x128xf32>
    %c0_3 = arith.constant 0 : index
    %c0_4 = arith.constant 0 : index
    %4 = vector.load %arg6[%c0_3, %c0_4] : memref<4x128xf32, #tpu.memory_space<vmem>>, vector<1x128xf32>
    %5 = vector.broadcast %4 : vector<1x128xf32> to vector<16x128xf32>
    %6 = arith.addf %3, %5 : vector<16x128xf32>
    %cst_5 = arith.constant 0.000000e+00 : f32
    %7 = vector.broadcast %cst_5 : f32 to vector<16x128xf32>
    %8 = arith.cmpf ogt, %6, %7 : vector<16x128xf32>
    %cst_6 = arith.constant 2.000000e-01 : f32
    %9 = vector.broadcast %cst_6 : f32 to vector<16x128xf32>
    %10 = arith.mulf %9, %6 : vector<16x128xf32>
    %11 = arith.select %8, %6, %10 : vector<16x128xi1>, vector<16x128xf32>
    %12 = arith.truncf %11 : vector<16x128xf32> to vector<16x128xbf16>
    %c0_7 = arith.constant 0 : index
    %c0_8 = arith.constant 0 : index
    %13 = vector.load %arg3[%c0_7, %c0_8] : memref<128x128xbf16, #tpu.memory_space<vmem>>, vector<128x128xbf16>
    %cst_9 = arith.constant dense<0.000000e+00> : vector<16x128xf32>
    %14 = tpu.matmul %12, %13, %cst_9 {dimension_numbers = #tpu.dot_dimension_numbers<[1], [0], [0], [1], [0, 0, 1, 1], [], []>} : vector<16x128xbf16>, vector<128x128xbf16>, vector<16x128xf32> -> vector<16x128xf32>
    %c1 = arith.constant 1 : index
    %c0_10 = arith.constant 0 : index
    %15 = vector.load %arg6[%c1, %c0_10] : memref<4x128xf32, #tpu.memory_space<vmem>>, vector<1x128xf32>
    %16 = vector.broadcast %15 : vector<1x128xf32> to vector<16x128xf32>
    %17 = arith.addf %14, %16 : vector<16x128xf32>
    %cst_11 = arith.constant 0.000000e+00 : f32
    %18 = vector.broadcast %cst_11 : f32 to vector<16x128xf32>
    %19 = arith.cmpf ogt, %17, %18 : vector<16x128xf32>
    %cst_12 = arith.constant 2.000000e-01 : f32
    %20 = vector.broadcast %cst_12 : f32 to vector<16x128xf32>
    %21 = arith.mulf %20, %17 : vector<16x128xf32>
    %22 = arith.select %19, %17, %21 : vector<16x128xi1>, vector<16x128xf32>
    %23 = arith.truncf %22 : vector<16x128xf32> to vector<16x128xbf16>
    %c0_13 = arith.constant 0 : index
    %c0_14 = arith.constant 0 : index
    %24 = vector.load %arg4[%c0_13, %c0_14] : memref<128x128xbf16, #tpu.memory_space<vmem>>, vector<128x128xbf16>
    %cst_15 = arith.constant dense<0.000000e+00> : vector<16x128xf32>
    %25 = tpu.matmul %23, %24, %cst_15 {dimension_numbers = #tpu.dot_dimension_numbers<[1], [0], [0], [1], [0, 0, 1, 1], [], []>} : vector<16x128xbf16>, vector<128x128xbf16>, vector<16x128xf32> -> vector<16x128xf32>
    %c2 = arith.constant 2 : index
    %c0_16 = arith.constant 0 : index
    %26 = vector.load %arg6[%c2, %c0_16] : memref<4x128xf32, #tpu.memory_space<vmem>>, vector<1x128xf32>
    %27 = vector.broadcast %26 : vector<1x128xf32> to vector<16x128xf32>
    %28 = arith.addf %25, %27 : vector<16x128xf32>
    %cst_17 = arith.constant 0.000000e+00 : f32
    %29 = vector.broadcast %cst_17 : f32 to vector<16x128xf32>
    %30 = arith.cmpf ogt, %28, %29 : vector<16x128xf32>
    %cst_18 = arith.constant 2.000000e-01 : f32
    %31 = vector.broadcast %cst_18 : f32 to vector<16x128xf32>
    %32 = arith.mulf %31, %28 : vector<16x128xf32>
    %33 = arith.select %30, %28, %32 : vector<16x128xi1>, vector<16x128xf32>
    %34 = arith.truncf %33 : vector<16x128xf32> to vector<16x128xbf16>
    %c0_19 = arith.constant 0 : index
    %c0_20 = arith.constant 0 : index
    %35 = vector.load %arg5[%c0_19, %c0_20] : memref<128x128xbf16, #tpu.memory_space<vmem>>, vector<128x128xbf16>
    %cst_21 = arith.constant dense<0.000000e+00> : vector<16x128xf32>
    %36 = tpu.matmul %34, %35, %cst_21 {dimension_numbers = #tpu.dot_dimension_numbers<[1], [0], [0], [1], [0, 0, 1, 1], [], []>} : vector<16x128xbf16>, vector<128x128xbf16>, vector<16x128xf32> -> vector<16x128xf32>
    %c3 = arith.constant 3 : index
    %c0_22 = arith.constant 0 : index
    %37 = vector.load %arg6[%c3, %c0_22] : memref<4x128xf32, #tpu.memory_space<vmem>>, vector<1x128xf32>
    %38 = vector.broadcast %37 : vector<1x128xf32> to vector<16x128xf32>
    %39 = arith.addf %36, %38 : vector<16x128xf32>
    %40 = math.tanh %39 : vector<16x128xf32>
    %41 = arith.truncf %40 : vector<16x128xf32> to vector<16x128xbf16>
    %c0_23 = arith.constant 0 : index
    %c0_24 = arith.constant 0 : index
    %42 = vector.load %arg7[%c0_23, %c0_24] : memref<16x128xbf16, #tpu.memory_space<vmem>>, vector<16x128xbf16>
    tpu.vector_store %arg7[%c0_23, %c0_24], %41 {strides = array<i32>} : memref<16x128xbf16, #tpu.memory_space<vmem>>, vector<16x128xbf16>,
    return
  }
  func.func @transform_0(%arg0: i32) -> (i32, i32) {
    %c0_i32 = arith.constant 0 : i32
    %c0_i32_0 = arith.constant 0 : i32
    return %arg0, %c0_i32 : i32, i32
  }
  func.func @transform_1(%arg0: i32) -> (i32, i32) {
    %c0_i32 = arith.constant 0 : i32
    %c0_i32_0 = arith.constant 0 : i32
    %c0_i32_1 = arith.constant 0 : i32
    return %c0_i32, %c0_i32_0 : i32, i32
  }
  func.func @transform_2(%arg0: i32) -> (i32, i32) {
    %c0_i32 = arith.constant 0 : i32
    %c0_i32_0 = arith.constant 0 : i32
    %c0_i32_1 = arith.constant 0 : i32
    return %c0_i32, %c0_i32_0 : i32, i32
  }
  func.func @transform_3(%arg0: i32) -> (i32, i32) {
    %c0_i32 = arith.constant 0 : i32
    %c0_i32_0 = arith.constant 0 : i32
    %c0_i32_1 = arith.constant 0 : i32
    return %c0_i32, %c0_i32_0 : i32, i32
  }
  func.func @transform_4(%arg0: i32) -> (i32, i32) {
    %c0_i32 = arith.constant 0 : i32
    %c0_i32_0 = arith.constant 0 : i32
    %c0_i32_1 = arith.constant 0 : i32
    return %c0_i32, %c0_i32_0 : i32, i32
  }
  func.func @transform_5(%arg0: i32) -> (i32, i32) {
    %c0_i32 = arith.constant 0 : i32
    %c0_i32_0 = arith.constant 0 : i32
    %c0_i32_1 = arith.constant 0 : i32
    return %c0_i32, %c0_i32_0 : i32, i32
  }
  func.func @transform_6(%arg0: i32) -> (i32, i32) {
    %c0_i32 = arith.constant 0 : i32
    %c0_i32_0 = arith.constant 0 : i32
    return %arg0, %c0_i32 : i32, i32
  }
}

</mosaic_0001>

<llo_original>
// kernel: tpu_custom_call.1
$region0: #{tpu_custom_call.1}
  #allocation0 [shape = 'u32[]', space=smem, size = 0x4, offset = 0x4, fixed_abs, tag = 'smem constant byte address 0x4 - core index']
  #allocation1 [shape = 'u32[144,128]{1,0:T(1,128)}', space=vmem, size = 0x12000, scoped, tag = 'internal scratch']
  %s0 = inlined_call_operand.hbm [shape: f32[16,32], index: 0, kind: input, shape index: {}]
  %s1 = inlined_call_operand.hbm [shape: bf16[32,128], index: 1, kind: input, shape index: {}]
  %s2 = inlined_call_operand.hbm [shape: bf16[128,128], index: 2, kind: input, shape index: {}]
  %s3 = inlined_call_operand.hbm [shape: bf16[128,128], index: 3, kind: input, shape index: {}]
  %s4 = inlined_call_operand.hbm [shape: bf16[128,128], index: 4, kind: input, shape index: {}]
  %s5 = inlined_call_operand.vmem [shape: f32[4,128], index: 5, kind: input, shape index: {}]
  %s6 = inlined_call_operand.hbm [shape: bf16[16,128], index: 6, kind: output, shape index: {}]
  %s7 = sld [smem:[#allocation0]]
  $region54: #{tpu_custom_call.1} parent=0
    _
  %s9 = ssub.s32 1, %s7
  %s10 = scalar_select 0, %s9, %s7
  $region1: #{tpu_custom_call.1} parent=0
    #allocation2 [shape = 'u8[8192]{0}', space=vmem, size = 0x2000, scoped, tag = 'input window, operand 0, single buffered']
    #allocation3 [shape = 's32[1]{0}', space=sflag, size = 0x4, scoped, tag = 'scoped memory for tpu_custom_call.1']
    #allocation4 [shape = 's32[1]{0}', space=sflag, size = 0x4, scoped, tag = 'scoped memory for tpu_custom_call.1']
    #allocation5 [shape = 'u8[8192]{0}', space=vmem, size = 0x2000, scoped, tag = 'input window, operand 1, single buffered']
    #allocation6 [shape = 's32[1]{0}', space=sflag, size = 0x4, scoped, tag = 'scoped memory for tpu_custom_call.1']
    #allocation7 [shape = 'u8[32768]{0}', space=vmem, size = 0x8000, scoped, tag = 'input window, operand 2, single buffered']
    #allocation8 [shape = 'u8[32768]{0}', space=vmem, size = 0x8000, scoped, tag = 'input window, operand 3, single buffered']
    #allocation9 [shape = 's32[1]{0}', space=sflag, size = 0x4, scoped, tag = 'scoped memory for tpu_custom_call.1']
    #allocation10 [shape = 'u8[32768]{0}', space=vmem, size = 0x8000, scoped, tag = 'input window, operand 4, single buffered']
    #allocation11 [shape = 'u8[4096]{0}', space=vmem, size = 0x1000, scoped, tag = 'output window, operand 0, single buffered']
    %11 = vsyncpa [#allocation3], 0
    %12 = vsyncpa [#allocation6], 0
    %13 = vsyncpa [#allocation9], 0
    %14 = vsyncpa [#allocation4], 0
    // Predicated region
    $region2: #{tpu_custom_call.1} parent=1 // pred_check
      _
    $region3: #{tpu_custom_call.1} parent=1 // pred_check_branch
      %16 = sbr.rel (0) target = $region5
    $region4: #{tpu_custom_call.1} parent=1 // pred_region
      %s18 = ssub.s32 256, 256
      %19 = vsyncadd [#allocation3], %s18
      %s20 = sshll.u32 [#allocation2], 4
      %s21 = int_to_ptr.vmem [resolvable:$true] %s20
      %26 = dma.hbm_to_vmem [thread:$0]  %s0, 256, %s21, [#allocation3], 128, 128, 8
    $region5: #{tpu_custom_call.1} parent=1 // pred_fallthru
      _
    // Predicated region
    $region6: #{tpu_custom_call.1} parent=1 // pred_check
      _
    $region7: #{tpu_custom_call.1} parent=1 // pred_check_branch
      %28 = sbr.rel (0) target = $region9
    $region8: #{tpu_custom_call.1} parent=1 // pred_region
      %s30 = ssub.s32 256, 256
      %31 = vsyncadd [#allocation6], %s30
      %s32 = sshll.u32 [#allocation5], 4
      %s33 = int_to_ptr.vmem [resolvable:$true] %s32
      %38 = dma.hbm_to_vmem [thread:$0]  %s1, 256, %s33, [#allocation6], 64, 64, 4
    $region9: #{tpu_custom_call.1} parent=1 // pred_fallthru
      _
    // Predicated region
    $region10: #{tpu_custom_call.1} parent=1 // pred_check
      _
    $region11: #{tpu_custom_call.1} parent=1 // pred_check_branch
      %40 = sbr.rel (0) target = $region13
    $region12: #{tpu_custom_call.1} parent=1 // pred_region
      %s42 = ssub.s32 1024, 1024
      %43 = vsyncadd [#allocation6], %s42
      %s44 = sshll.u32 [#allocation7], 4
      %s45 = int_to_ptr.vmem [resolvable:$true] %s44
      %50 = dma.hbm_to_vmem [thread:$0]  %s2, 1024, %s45, [#allocation6], 64, 64, 4
    $region13: #{tpu_custom_call.1} parent=1 // pred_fallthru
      _
    // Predicated region
    $region14: #{tpu_custom_call.1} parent=1 // pred_check
      _
    $region15: #{tpu_custom_call.1} parent=1 // pred_check_branch
      %52 = sbr.rel (0) target = $region17
    $region16: #{tpu_custom_call.1} parent=1 // pred_region
      %s54 = ssub.s32 1024, 1024
      %55 = vsyncadd [#allocation9], %s54
      %s56 = sshll.u32 [#allocation8], 4
      %s57 = int_to_ptr.vmem [resolvable:$true] %s56
      %62 = dma.hbm_to_vmem [thread:$0]  %s3, 1024, %s57, [#allocation9], 64, 64, 4
    $region17: #{tpu_custom_call.1} parent=1 // pred_fallthru
      _
    // Predicated region
    $region18: #{tpu_custom_call.1} parent=1 // pred_check
      _
    $region19: #{tpu_custom_call.1} parent=1 // pred_check_branch
      %64 = sbr.rel (0) target = $region21
    $region20: #{tpu_custom_call.1} parent=1 // pred_region
      %s66 = ssub.s32 1024, 1024
      %67 = vsyncadd [#allocation9], %s66
      %s68 = sshll.u32 [#allocation10], 4
      %s69 = int_to_ptr.vmem [resolvable:$true] %s68
      %74 = dma.hbm_to_vmem [thread:$0]  %s4, 1024, %s69, [#allocation9], 64, 64, 4
    $region21: #{tpu_custom_call.1} parent=1 // pred_fallthru
      _
    // Predicated region
    $region22: #{tpu_custom_call.1} parent=1 // pred_check
      _
    $region23: #{tpu_custom_call.1} parent=1 // pred_check_branch
      %76 = sbr.rel (0) target = $region25
    $region24: #{tpu_custom_call.1} parent=1 // pred_region
      _
    $region25: #{tpu_custom_call.1} parent=1 // pred_fallthru
      _
    // Predicated region
    $region26: #{tpu_custom_call.1} parent=1 // pred_check
      _
    $region27: #{tpu_custom_call.1} parent=1 // pred_check_branch
      %78 = sbr.rel (0) target = $region29
    $region28: #{tpu_custom_call.1} parent=1 // pred_region
      %79 = dma.done [#allocation3], 256
    $region29: #{tpu_custom_call.1} parent=1 // pred_fallthru
      _
    // Predicated region
    $region30: #{tpu_custom_call.1} parent=1 // pred_check
      _
    $region31: #{tpu_custom_call.1} parent=1 // pred_check_branch
      %81 = sbr.rel (0) target = $region33
    $region32: #{tpu_custom_call.1} parent=1 // pred_region
      %82 = dma.done [#allocation6], 256
    $region33: #{tpu_custom_call.1} parent=1 // pred_fallthru
      _
    // Predicated region
    $region34: #{tpu_custom_call.1} parent=1 // pred_check
      _
    $region35: #{tpu_custom_call.1} parent=1 // pred_check_branch
      %84 = sbr.rel (0) target = $region37
    $region36: #{tpu_custom_call.1} parent=1 // pred_region
      %85 = dma.done [#allocation6], 1024
    $region37: #{tpu_custom_call.1} parent=1 // pred_fallthru
      _
    // Predicated region
    $region38: #{tpu_custom_call.1} parent=1 // pred_check
      _
    $region39: #{tpu_custom_call.1} parent=1 // pred_check_branch
      %87 = sbr.rel (0) target = $region41
    $region40: #{tpu_custom_call.1} parent=1 // pred_region
      %88 = dma.done [#allocation9], 1024
    $region41: #{tpu_custom_call.1} parent=1 // pred_fallthru
      _
    // Predicated region
    $region42: #{tpu_custom_call.1} parent=1 // pred_check
      _
    $region43: #{tpu_custom_call.1} parent=1 // pred_check_branch
      %90 = sbr.rel (0) target = $region45
    $region44: #{tpu_custom_call.1} parent=1 // pred_region
      %91 = dma.done [#allocation9], 1024
    $region45: #{tpu_custom_call.1} parent=1 // pred_fallthru
      _
    %v93 = vld [vmem:[#allocation2] sm:$0xff]
    %v94 = vld [vmem:[#allocation2 + $0x8] sm:$0xff]
    %v95 = vpack.c.bf16 %v94, %v93
    %v96 = vld [vmem:[#allocation5] sm:$0xf]
    %v97 = vld [vmem:[#allocation5 + $0x4] sm:$0xf]
    %v98 = vld [vmem:[#allocation5 + $0x8] sm:$0xf]
    %v99 = vld [vmem:[#allocation5 + $0xc] sm:$0xf]
    %v100 = vld [vmem:[%s5] sm:$0x1]
    %v101 = vlaneseq
    %v102 = vshrl.u32 %v101, 7
    %v103 = vsub.s32 0, %v102
    %v104 = vrot.slane %v100, %v103
    %v109 = vunpack.c.l.b16 %v96
    %v110 = vunpack.c.l.b16 %v97
    %v111 = vunpack.c.l.b16 %v98
    %v112 = vunpack.c.l.b16 %v99
    %v113 = vpack.c.b16 %v110, %v109
    %v114 = vpack.c.b16 %v112, %v111
    %vm117 = vcmask 261120
    %v119 = vsel %vm117, %v95, 0
    %121 = vmatprep.subr.bf16.mxu0 0
    %122 = vmatpush1.bf16.msra.mxu0 %v113
    %123 = vmatprep.subr.bf16.mxu0 0
    %124 = vmatpush1.bf16.msra.mxu0 %v114
    %125 = vmatprep.subr.bf16.mxu0 0
    %126 = vmatpush1.bf16.msra.mxu0 0
    %127 = vmatprep.subr.bf16.mxu0 0
    %128 = vmatpush1.bf16.msra.mxu0 0
    %129 = vmatprep.subr.bf16.mxu0 0
    %130 = vmatpush1.bf16.msra.mxu0 0
    %131 = vmatprep.subr.bf16.mxu0 0
    %132 = vmatpush1.bf16.msra.mxu0 0
    %133 = vmatprep.subr.bf16.mxu0 0
    %134 = vmatpush1.bf16.msra.mxu0 0
    %135 = vmatprep.subr.bf16.mxu0 0
    %136 = vmatpush1.bf16.msra.mxu0 0
    %137 = vmatprep.subr.bf16.mxu0 0
    %138 = vmatpush1.bf16.msra.mxu0 0
    %139 = vmatprep.subr.bf16.mxu0 0
    %140 = vmatpush1.bf16.msra.mxu0 0
    %141 = vmatprep.subr.bf16.mxu0 0
    %142 = vmatpush1.bf16.msra.mxu0 0
    %143 = vmatprep.subr.bf16.mxu0 0
    %144 = vmatpush1.bf16.msra.mxu0 0
    %145 = vmatprep.subr.bf16.mxu0 0
    %146 = vmatpush1.bf16.msra.mxu0 0
    %147 = vmatprep.subr.bf16.mxu0 0
    %148 = vmatpush1.bf16.msra.mxu0 0
    %149 = vmatprep.subr.bf16.mxu0 0
    %150 = vmatpush1.bf16.msra.mxu0 0
    %151 = vmatprep.subr.bf16.mxu0 0
    %152 = vmatpush1.bf16.msra.mxu0 0
    %153 = vmatprep.mubr.bf16.mxu0 0
    %154 = vmatmul.mubr.bf16.gmra.mrb[0].mxu0 %v119
    %v155 = vpop.f32.mrb[0].mxu0
    %v156 = vadd.f32 %v104, %v155
    %v157 = vpop.f32.mrb[0].mxu0
    %v158 = vpop.f32.mrb[0].mxu0
    %v159 = vadd.f32 %v104, %v158
    %v160 = vpop.f32.mrb[0].mxu0
    %161 = vdwg.mxu0
    %vm162 = vcmp.gt.f32.partialorder %v156, 0.0
    %vm163 = vcmp.gt.f32.partialorder %v159, 0.0
    %v164 = vmul.f32 %v156, 0.2
    %v165 = vmul.f32 %v159, 0.2
    %v166 = vsel %vm162, %v156, %v164
    %v167 = vsel %vm163, %v159, %v165
    %v168 = vpack.c.bf16 %v167, %v166
    %v169 = vld [vmem:[#allocation7] sm:$0xf]
    %v170 = vld [vmem:[#allocation7 + $0x4] sm:$0xf]
    %v171 = vld [vmem:[#allocation7 + $0x8] sm:$0xf]
    %v172 = vld [vmem:[#allocation7 + $0xc] sm:$0xf]
    %v173 = vld [vmem:[#allocation7 + $0x10] sm:$0xf]
    %v174 = vld [vmem:[#allocation7 + $0x14] sm:$0xf]
    %v175 = vld [vmem:[#allocation7 + $0x18] sm:$0xf]
    %v176 = vld [vmem:[#allocation7 + $0x1c] sm:$0xf]
    %v177 = vld [vmem:[#allocation7 + $0x20] sm:$0xf]
    %v178 = vld [vmem:[#allocation7 + $0x24] sm:$0xf]
    %v179 = vld [vmem:[#allocation7 + $0x28] sm:$0xf]
    %v180 = vld [vmem:[#allocation7 + $0x2c] sm:$0xf]
    %v181 = vld [vmem:[#allocation7 + $0x30] sm:$0xf]
    %v182 = vld [vmem:[#allocation7 + $0x34] sm:$0xf]
    %v183 = vld [vmem:[#allocation7 + $0x38] sm:$0xf]
    %v184 = vld [vmem:[#allocation7 + $0x3c] sm:$0xf]
    %v185 = vld [vmem:[%s5 + $0x1] sm:$0x1]
    %v186 = vlaneseq
    %v187 = vshrl.u32 %v186, 7
    %v188 = vsub.s32 0, %v187
    %v189 = vrot.slane %v185, %v188
    %v206 = vunpack.c.l.b16 %v169
    %v207 = vunpack.c.l.b16 %v170
    %v208 = vunpack.c.l.b16 %v171
    %v209 = vunpack.c.l.b16 %v172
    %v210 = vunpack.c.l.b16 %v173
    %v211 = vunpack.c.l.b16 %v174
    %v212 = vunpack.c.l.b16 %v175
    %v213 = vunpack.c.l.b16 %v176
    %v214 = vunpack.c.l.b16 %v177
    %v215 = vunpack.c.l.b16 %v178
    %v216 = vunpack.c.l.b16 %v179
    %v217 = vunpack.c.l.b16 %v180
    %v218 = vunpack.c.l.b16 %v181
    %v219 = vunpack.c.l.b16 %v182
    %v220 = vunpack.c.l.b16 %v183
    %v221 = vunpack.c.l.b16 %v184
    %v222 = vpack.c.b16 %v207, %v206
    %v223 = vpack.c.b16 %v209, %v208
    %v224 = vpack.c.b16 %v211, %v210
    %v225 = vpack.c.b16 %v213, %v212
    %v226 = vpack.c.b16 %v215, %v214
    %v227 = vpack.c.b16 %v217, %v216
    %v228 = vpack.c.b16 %v219, %v218
    %v229 = vpack.c.b16 %v221, %v220
    %238 = vmatprep.subr.bf16.mxu0 0
    %239 = vmatpush1.bf16.msra.mxu0 %v222
    %240 = vmatprep.subr.bf16.mxu0 0
    %241 = vmatpush1.bf16.msra.mxu0 %v223
    %242 = vmatprep.subr.bf16.mxu0 0
    %243 = vmatpush1.bf16.msra.mxu0 %v224
    %244 = vmatprep.subr.bf16.mxu0 0
    %245 = vmatpush1.bf16.msra.mxu0 %v225
    %246 = vmatprep.subr.bf16.mxu0 0
    %247 = vmatpush1.bf16.msra.mxu0 %v226
    %248 = vmatprep.subr.bf16.mxu0 0
    %249 = vmatpush1.bf16.msra.mxu0 %v227
    %250 = vmatprep.subr.bf16.mxu0 0
    %251 = vmatpush1.bf16.msra.mxu0 %v228
    %252 = vmatprep.subr.bf16.mxu0 0
    %253 = vmatpush1.bf16.msra.mxu0 %v229
    %254 = vmatprep.subr.bf16.mxu0 0
    %255 = vmatpush1.bf16.msra.mxu0 0
    %256 = vmatprep.subr.bf16.mxu0 0
    %257 = vmatpush1.bf16.msra.mxu0 0
    %258 = vmatprep.subr.bf16.mxu0 0
    %259 = vmatpush1.bf16.msra.mxu0 0
    %260 = vmatprep.subr.bf16.mxu0 0
    %261 = vmatpush1.bf16.msra.mxu0 0
    %262 = vmatprep.subr.bf16.mxu0 0
    %263 = vmatpush1.bf16.msra.mxu0 0
    %264 = vmatprep.subr.bf16.mxu0 0
    %265 = vmatpush1.bf16.msra.mxu0 0
    %266 = vmatprep.subr.bf16.mxu0 0
    %267 = vmatpush1.bf16.msra.mxu0 0
    %268 = vmatprep.subr.bf16.mxu0 0
    %269 = vmatpush1.bf16.msra.mxu0 0
    %270 = vmatprep.mubr.bf16.mxu0 0
    %271 = vmatmul.mubr.bf16.gmra.mrb[0].mxu0 %v168
    %v272 = vpop.f32.mrb[0].mxu0
    %v273 = vadd.f32 %v189, %v272
    %v274 = vpop.f32.mrb[0].mxu0
    %v275 = vpop.f32.mrb[0].mxu0
    %v276 = vadd.f32 %v189, %v275
    %v277 = vpop.f32.mrb[0].mxu0
    %278 = vdwg.mxu0
    %vm279 = vcmp.gt.f32.partialorder %v273, 0.0
    %vm280 = vcmp.gt.f32.partialorder %v276, 0.0
    %v281 = vmul.f32 %v273, 0.2
    %v282 = vmul.f32 %v276, 0.2
    %v283 = vsel %vm279, %v273, %v281
    %v284 = vsel %vm280, %v276, %v282
    %v285 = vpack.c.bf16 %v284, %v283
    %v286 = vld [vmem:[#allocation8] sm:$0xf]
    %v287 = vld [vmem:[#allocation8 + $0x4] sm:$0xf]
    %v288 = vld [vmem:[#allocation8 + $0x8] sm:$0xf]
    %v289 = vld [vmem:[#allocation8 + $0xc] sm:$0xf]
    %v290 = vld [vmem:[#allocation8 + $0x10] sm:$0xf]
    %v291 = vld [vmem:[#allocation8 + $0x14] sm:$0xf]
    %v292 = vld [vmem:[#allocation8 + $0x18] sm:$0xf]
    %v293 = vld [vmem:[#allocation8 + $0x1c] sm:$0xf]
    %v294 = vld [vmem:[#allocation8 + $0x20] sm:$0xf]
    %v295 = vld [vmem:[#allocation8 + $0x24] sm:$0xf]
    %v296 = vld [vmem:[#allocation8 + $0x28] sm:$0xf]
    %v297 = vld [vmem:[#allocation8 + $0x2c] sm:$0xf]
    %v298 = vld [vmem:[#allocation8 + $0x30] sm:$0xf]
    %v299 = vld [vmem:[#allocation8 + $0x34] sm:$0xf]
    %v300 = vld [vmem:[#allocation8 + $0x38] sm:$0xf]
    %v301 = vld [vmem:[#allocation8 + $0x3c] sm:$0xf]
    %v302 = vld [vmem:[%s5 + $0x2] sm:$0x1]
    %v303 = vlaneseq
    %v304 = vshrl.u32 %v303, 7
    %v305 = vsub.s32 0, %v304
    %v306 = vrot.slane %v302, %v305
    %v323 = vunpack.c.l.b16 %v286
    %v324 = vunpack.c.l.b16 %v287
    %v325 = vunpack.c.l.b16 %v288
    %v326 = vunpack.c.l.b16 %v289
    %v327 = vunpack.c.l.b16 %v290
    %v328 = vunpack.c.l.b16 %v291
    %v329 = vunpack.c.l.b16 %v292
    %v330 = vunpack.c.l.b16 %v293
    %v331 = vunpack.c.l.b16 %v294
    %v332 = vunpack.c.l.b16 %v295
    %v333 = vunpack.c.l.b16 %v296
    %v334 = vunpack.c.l.b16 %v297
    %v335 = vunpack.c.l.b16 %v298
    %v336 = vunpack.c.l.b16 %v299
    %v337 = vunpack.c.l.b16 %v300
    %v338 = vunpack.c.l.b16 %v301
    %v339 = vpack.c.b16 %v324, %v323
    %v340 = vpack.c.b16 %v326, %v325
    %v341 = vpack.c.b16 %v328, %v327
    %v342 = vpack.c.b16 %v330, %v329
    %v343 = vpack.c.b16 %v332, %v331
    %v344 = vpack.c.b16 %v334, %v333
    %v345 = vpack.c.b16 %v336, %v335
    %v346 = vpack.c.b16 %v338, %v337
    %355 = vmatprep.subr.bf16.mxu0 0
    %356 = vmatpush1.bf16.msra.mxu0 %v339
    %357 = vmatprep.subr.bf16.mxu0 0
    %358 = vmatpush1.bf16.msra.mxu0 %v340
    %359 = vmatprep.subr.bf16.mxu0 0
    %360 = vmatpush1.bf16.msra.mxu0 %v341
    %361 = vmatprep.subr.bf16.mxu0 0
    %362 = vmatpush1.bf16.msra.mxu0 %v342
    %363 = vmatprep.subr.bf16.mxu0 0
    %364 = vmatpush1.bf16.msra.mxu0 %v343
    %365 = vmatprep.subr.bf16.mxu0 0
    %366 = vmatpush1.bf16.msra.mxu0 %v344
    %367 = vmatprep.subr.bf16.mxu0 0
    %368 = vmatpush1.bf16.msra.mxu0 %v345
    %369 = vmatprep.subr.bf16.mxu0 0
    %370 = vmatpush1.bf16.msra.mxu0 %v346
    %371 = vmatprep.subr.bf16.mxu0 0
    %372 = vmatpush1.bf16.msra.mxu0 0
    %373 = vmatprep.subr.bf16.mxu0 0
    %374 = vmatpush1.bf16.msra.mxu0 0
    %375 = vmatprep.subr.bf16.mxu0 0
    %376 = vmatpush1.bf16.msra.mxu0 0
    %377 = vmatprep.subr.bf16.mxu0 0
    %378 = vmatpush1.bf16.msra.mxu0 0
    %379 = vmatprep.subr.bf16.mxu0 0
    %380 = vmatpush1.bf16.msra.mxu0 0
    %381 = vmatprep.subr.bf16.mxu0 0
    %382 = vmatpush1.bf16.msra.mxu0 0
    %383 = vmatprep.subr.bf16.mxu0 0
    %384 = vmatpush1.bf16.msra.mxu0 0
    %385 = vmatprep.subr.bf16.mxu0 0
    %386 = vmatpush1.bf16.msra.mxu0 0
    %387 = vmatprep.mubr.bf16.mxu0 0
    %388 = vmatmul.mubr.bf16.gmra.mrb[0].mxu0 %v285
    %v389 = vpop.f32.mrb[0].mxu0
    %v390 = vadd.f32 %v306, %v389
    %v391 = vpop.f32.mrb[0].mxu0
    %v392 = vpop.f32.mrb[0].mxu0
    %v393 = vadd.f32 %v306, %v392
    %v394 = vpop.f32.mrb[0].mxu0
    %395 = vdwg.mxu0
    %vm396 = vcmp.gt.f32.partialorder %v390, 0.0
    %vm397 = vcmp.gt.f32.partialorder %v393, 0.0
    %v398 = vmul.f32 %v390, 0.2
    %v399 = vmul.f32 %v393, 0.2
    %v400 = vsel %vm396, %v390, %v398
    %v401 = vsel %vm397, %v393, %v399
    %v402 = vpack.c.bf16 %v401, %v400
    %v403 = vld [vmem:[#allocation10] sm:$0xf]
    %v404 = vld [vmem:[#allocation10 + $0x4] sm:$0xf]
    %v405 = vld [vmem:[#allocation10 + $0x8] sm:$0xf]
    %v406 = vld [vmem:[#allocation10 + $0xc] sm:$0xf]
    %v407 = vld [vmem:[#allocation10 + $0x10] sm:$0xf]
    %v408 = vld [vmem:[#allocation10 + $0x14] sm:$0xf]
    %v409 = vld [vmem:[#allocation10 + $0x18] sm:$0xf]
    %v410 = vld [vmem:[#allocation10 + $0x1c] sm:$0xf]
    %v411 = vld [vmem:[#allocation10 + $0x20] sm:$0xf]
    %v412 = vld [vmem:[#allocation10 + $0x24] sm:$0xf]
    %v413 = vld [vmem:[#allocation10 + $0x28] sm:$0xf]
    %v414 = vld [vmem:[#allocation10 + $0x2c] sm:$0xf]
    %v415 = vld [vmem:[#allocation10 + $0x30] sm:$0xf]
    %v416 = vld [vmem:[#allocation10 + $0x34] sm:$0xf]
    %v417 = vld [vmem:[#allocation10 + $0x38] sm:$0xf]
    %v418 = vld [vmem:[#allocation10 + $0x3c] sm:$0xf]
    %v419 = vld [vmem:[%s5 + $0x3] sm:$0x1]
    %v420 = vlaneseq
    %v421 = vshrl.u32 %v420, 7
    %v422 = vsub.s32 0, %v421
    %v423 = vrot.slane %v419, %v422
    %v440 = vunpack.c.l.b16 %v403
    %v441 = vunpack.c.l.b16 %v404
    %v442 = vunpack.c.l.b16 %v405
    %v443 = vunpack.c.l.b16 %v406
    %v444 = vunpack.c.l.b16 %v407
    %v445 = vunpack.c.l.b16 %v408
    %v446 = vunpack.c.l.b16 %v409
    %v447 = vunpack.c.l.b16 %v410
    %v448 = vunpack.c.l.b16 %v411
    %v449 = vunpack.c.l.b16 %v412
    %v450 = vunpack.c.l.b16 %v413
    %v451 = vunpack.c.l.b16 %v414
    %v452 = vunpack.c.l.b16 %v415
    %v453 = vunpack.c.l.b16 %v416
    %v454 = vunpack.c.l.b16 %v417
    %v455 = vunpack.c.l.b16 %v418
    %v456 = vpack.c.b16 %v441, %v440
    %v457 = vpack.c.b16 %v443, %v442
    %v458 = vpack.c.b16 %v445, %v444
    %v459 = vpack.c.b16 %v447, %v446
    %v460 = vpack.c.b16 %v449, %v448
    %v461 = vpack.c.b16 %v451, %v450
    %v462 = vpack.c.b16 %v453, %v452
    %v463 = vpack.c.b16 %v455, %v454
    %472 = vmatprep.subr.bf16.mxu0 0
    %473 = vmatpush1.bf16.msra.mxu0 %v456
    %474 = vmatprep.subr.bf16.mxu0 0
    %475 = vmatpush1.bf16.msra.mxu0 %v457
    %476 = vmatprep.subr.bf16.mxu0 0
    %477 = vmatpush1.bf16.msra.mxu0 %v458
    %478 = vmatprep.subr.bf16.mxu0 0
    %479 = vmatpush1.bf16.msra.mxu0 %v459
    %480 = vmatprep.subr.bf16.mxu0 0
    %481 = vmatpush1.bf16.msra.mxu0 %v460
    %482 = vmatprep.subr.bf16.mxu0 0
    %483 = vmatpush1.bf16.msra.mxu0 %v461
    %484 = vmatprep.subr.bf16.mxu0 0
    %485 = vmatpush1.bf16.msra.mxu0 %v462
    %486 = vmatprep.subr.bf16.mxu0 0
    %487 = vmatpush1.bf16.msra.mxu0 %v463
    %488 = vmatprep.subr.bf16.mxu0 0
    %489 = vmatpush1.bf16.msra.mxu0 0
    %490 = vmatprep.subr.bf16.mxu0 0
    %491 = vmatpush1.bf16.msra.mxu0 0
    %492 = vmatprep.subr.bf16.mxu0 0
    %493 = vmatpush1.bf16.msra.mxu0 0
    %494 = vmatprep.subr.bf16.mxu0 0
    %495 = vmatpush1.bf16.msra.mxu0 0
    %496 = vmatprep.subr.bf16.mxu0 0
    %497 = vmatpush1.bf16.msra.mxu0 0
    %498 = vmatprep.subr.bf16.mxu0 0
    %499 = vmatpush1.bf16.msra.mxu0 0
    %500 = vmatprep.subr.bf16.mxu0 0
    %501 = vmatpush1.bf16.msra.mxu0 0
    %502 = vmatprep.subr.bf16.mxu0 0
    %503 = vmatpush1.bf16.msra.mxu0 0
    %504 = vmatprep.mubr.bf16.mxu0 0
    %505 = vmatmul.mubr.bf16.gmra.mrb[0].mxu0 %v402
    %v506 = vpop.f32.mrb[0].mxu0
    %v507 = vadd.f32 %v423, %v506
    %v508 = vpop.f32.mrb[0].mxu0
    %v509 = vpop.f32.mrb[0].mxu0
    %v510 = vadd.f32 %v423, %v509
    %v511 = vpop.f32.mrb[0].mxu0
    %512 = vdwg.mxu0
    %v513 = vtanh.pop %v507
    %v514 = vtanh.pop %v510
    %v515 = vpack.c.bf16 %v514, %v513
    %v517 = vunpack.c.l.b16 %v515
    %v518 = vunpack.c.h.b16 %v515
    %v519 = vpack.c.b16 %v517, %v517
    %v520 = vpack.c.b16 %v518, %v518
    %523 = vst [vmem:[#allocation11] sm:$0xf] %v519
    %524 = vst [vmem:[#allocation11 + $0x4] sm:$0xf] %v520
    // Predicated region
    $region46: #{tpu_custom_call.1} parent=1 // pred_check
      _
    $region47: #{tpu_custom_call.1} parent=1 // pred_check_branch
      %526 = sbr.rel (0) target = $region49
    $region48: #{tpu_custom_call.1} parent=1 // pred_region
      %s528 = ssub.s32 128, 128
      %529 = vsyncadd [#allocation4], %s528
      %s530 = sshll.u32 [#allocation11], 4
      %s531 = int_to_ptr.vmem [resolvable:$true] %s530
      %536 = dma.vmem_to_hbm [thread:$0]  %s531, 128, %s6, [#allocation4], 64, 64, 4
    $region49: #{tpu_custom_call.1} parent=1 // pred_fallthru
      _
    // Predicated region
    $region50: #{tpu_custom_call.1} parent=1 // pred_check
      _
    $region51: #{tpu_custom_call.1} parent=1 // pred_check_branch
      %538 = sbr.rel (0) target = $region53
    $region52: #{tpu_custom_call.1} parent=1 // pred_region
      %539 = dma.done [#allocation4], 128
    $region53: #{tpu_custom_call.1} parent=1 // pred_fallthru
      _
    %540 = vsyncpa [#allocation3], 1
    %541 = vsyncpa [#allocation6], 1
    %542 = vsyncpa [#allocation9], 1
    %543 = vsyncpa [#allocation4], 1

</llo_original>
